<compile_context>
chip_gen: v6e
topology: v6e:2x2x1
jax: 0.10.0
libtpu: 0.0.40
codegen_flags: <defaults>
</compile_context>

<pallas_src>
import functools

import jax
import jax.numpy as jnp
from jax import lax
from jax.experimental import pallas as pl
from jax.experimental.pallas import tpu as pltpu


# ---------------------------------------------------------------------------
# helpers
# ---------------------------------------------------------------------------

def _round_up(n: int, m: int) -> int:
    return ((n + m - 1) // m) * m


def _vmem_budget_bytes() -> int:
    """~75% of physical VMEM (64 MiB on v7x, 128 MiB on v5e/v6e)."""
    try:
        cap = int(pltpu.get_tpu_info().vmem_capacity_bytes)
    except Exception:
        cap = 64 * 1024 * 1024          # conservative (v7x-sized) fallback
    return (cap * 3) // 4


# ---------------------------------------------------------------------------
# Pallas channel-attention kernels (used for both SELayer and CAModule)
# ---------------------------------------------------------------------------

def _fused_ca_call(x_flat, w1t, w2, inv_hw, vmem_limit):
    """Single pass: pool + gate + rescale, one grid step per batch element."""
    B, C, HWp = x_flat.shape
    Cr = w1t.shape[1]

    def kernel(x_ref, w1t_ref, w2_ref, o_ref):
        # Global average pool: f32 accumulation, lane reduce (XLU) + 1/HW const.
        y = jnp.sum(x_ref[0].astype(jnp.float32), axis=-1,
                    keepdims=True) * inv_hw                                  # (C, 1)
        # Tiny squeeze-excite gate on VPU/XLU only (no N=1 MXU matmuls).
        h = jnp.maximum(jnp.sum(w1t_ref[...] * y, axis=0, keepdims=True), 0.0)  # (1, Cr)
        s = jax.nn.sigmoid(jnp.sum(w2_ref[...] * h, axis=1, keepdims=True))     # (C, 1)
        # Re-read x from VMEM for the rescale (keeps live ranges short).
        o_ref[0] = (x_ref[0].astype(jnp.float32) * s).astype(o_ref.dtype)

    return pl.pallas_call(
        kernel,
        out_shape=jax.ShapeDtypeStruct((B, C, HWp), x_flat.dtype),
        grid_spec=pltpu.PrefetchScalarGridSpec(
            num_scalar_prefetch=0,
            grid=(B,),
            in_specs=[
                pl.BlockSpec((1, C, HWp), lambda b: (b, 0, 0)),
                pl.BlockSpec((C, Cr), lambda b: (0, 0)),      # resident weight
                pl.BlockSpec((C, Cr), lambda b: (0, 0)),      # resident weight
            ],
            out_specs=pl.BlockSpec((1, C, HWp), lambda b: (b, 0, 0)),
        ),
        compiler_params=pltpu.CompilerParams(
            dimension_semantics=("parallel",),
            vmem_limit_bytes=int(vmem_limit)),
    )(x_flat, w1t, w2)


def _two_pass_ca_call(x_flat, w1, w2, inv_hw, budget):
    """Two passes (pool -> gate -> rescale) for feature maps too big for VMEM.

    Costs one extra HBM read of x but keeps every block inside the VMEM budget
    and gives a (B, T) parallel grid for the memory-bound rescale (dual-core
    friendly on v7x)."""
    B, C, HWp = x_flat.shape
    itemsize = jnp.dtype(x_flat.dtype).itemsize

    # Spatial tile: as large as the double-buffered blocks allow.
    cap = min(budget // (4 * B * C * itemsize), budget // (8 * C * itemsize))
    hw_tile = max(128, min(HWp, (cap // 128) * 128))
    HWp2 = _round_up(HWp, hw_tile)
    if HWp2 != HWp:
        x_flat = jnp.pad(x_flat, ((0, 0), (0, 0), (0, HWp2 - HWp)))
    T = HWp2 // hw_tile

    # ---- pass 1: per-channel sums, accumulated across spatial tiles --------
    def pool_kernel(x_ref, sum_ref):
        @pl.when(pl.program_id(0) == 0)
        def _():
            sum_ref[...] = jnp.zeros_like(sum_ref)
        sum_ref[...] += jnp.sum(x_ref[...].astype(jnp.float32), axis=-1,
                                keepdims=True)

    sums = pl.pallas_call(
        pool_kernel,
        out_shape=jax.ShapeDtypeStruct((B, C, 1), jnp.float32),
        grid_spec=pltpu.PrefetchScalarGridSpec(
            num_scalar_prefetch=0,
            grid=(T,),
            in_specs=[pl.BlockSpec((B, C, hw_tile), lambda t: (0, 0, t))],
            out_specs=pl.BlockSpec((B, C, 1), lambda t: (0, 0, 0)),
        ),
        compiler_params=pltpu.CompilerParams(
            dimension_semantics=("arbitrary",),
            vmem_limit_bytes=int(budget)),
    )(x_flat)

    # ---- tiny gate (negligible FLOPs) in plain JAX --------------------------
    y = sums[:, :, 0] * inv_hw                                   # (B, C)
    h = jnp.maximum(y @ jnp.asarray(w1, jnp.float32).T, 0.0)     # (B, Cr)
    gate = jax.nn.sigmoid(h @ jnp.asarray(w2, jnp.float32).T)    # (B, C)
    gate = gate[:, :, None].astype(jnp.float32)                  # (B, C, 1)

    # ---- pass 2: elementwise rescale on a (B, T) parallel grid --------------
    def scale_kernel(x_ref, g_ref, o_ref):
        o_ref[0] = (x_ref[0].astype(jnp.float32) * g_ref[0]).astype(o_ref.dtype)

    out = pl.pallas_call(
        scale_kernel,
        out_shape=jax.ShapeDtypeStruct((B, C, HWp2), x_flat.dtype),
        grid_spec=pltpu.PrefetchScalarGridSpec(
            num_scalar_prefetch=0,
            grid=(B, T),
            in_specs=[
                pl.BlockSpec((1, C, hw_tile), lambda b, t: (b, 0, t)),
                pl.BlockSpec((1, C, 1), lambda b, t: (b, 0, 0)),
            ],
            out_specs=pl.BlockSpec((1, C, hw_tile), lambda b, t: (b, 0, t)),
        ),
        compiler_params=pltpu.CompilerParams(
            dimension_semantics=("parallel", "parallel"),
            vmem_limit_bytes=int(budget)),
    )(x_flat, gate)
    return out


def channel_attention(x_nchw, w1, w2, *, force_two_pass=False):
    """out = x * sigmoid(W2 @ relu(W1 @ avgpool_hw(x)))   (SELayer / CAModule).

    x_nchw: (B, C, H, W);  w1: (Cr, C);  w2: (C, Cr)."""
    B, C, H, W = x_nchw.shape
    Cr = w1.shape[0]
    HW = H * W
    inv_hw = 1.0 / float(HW)          # divide by the TRUE HW, not the padded one

    # Lane-dense layout: (B, C, HW) with HW padded to a multiple of 128 so the
    # store path uses full-width unmasked vst.
    HWp = _round_up(HW, 128)
    x_flat = x_nchw.reshape(B, C, HW)
    if HWp != HW:
        x_flat = jnp.pad(x_flat, ((0, 0), (0, 0), (0, HWp - HW)))

    w1f = jnp.asarray(w1, jnp.float32)             # (Cr, C)
    w2f = jnp.asarray(w2, jnp.float32)             # (C, Cr)

    budget = _vmem_budget_bytes()
    blk_bytes = C * HWp * jnp.dtype(x_flat.dtype).itemsize
    # double-buffered x + double-buffered out + (double-buffered) weights + slack
    fused_need = 4 * blk_bytes + 4 * C * Cr * 4 + (1 << 20)

    if (not force_two_pass) and fused_need <= budget:
        vmem_limit = min(max(fused_need, 32 * 1024 * 1024), budget)
        out_flat = _fused_ca_call(x_flat, w1f.T, w2f, inv_hw, vmem_limit)
    else:
        out_flat = _two_pass_ca_call(x_flat, w1f, w2f, inv_hw, budget)

    return out_flat[:, :, :HW].reshape(B, C, H, W)


def _channel_attention_ref(x, w1, w2, **_):
    """Pure-JAX reference of the SE / CA forward."""
    y = jnp.mean(x.astype(jnp.float32), axis=(2, 3))             # (B, C)
    h = jnp.maximum(y @ jnp.asarray(w1, jnp.float32).T, 0.0)
    s = jax.nn.sigmoid(h @ jnp.asarray(w2, jnp.float32).T)
    return (x.astype(jnp.float32) * s[:, :, None, None]).astype(x.dtype)


# ---------------------------------------------------------------------------
# Discriminator forward (convs via XLA, channel attention via Pallas)
# ---------------------------------------------------------------------------

def _conv2d(x, w, b=None, stride=1, pad=0):
    # TODO(synk): dense 4x4-stride-2 / 3x3 / KxK convolutions have no clean
    # single Pallas kernel here; they run through lax.conv_general_dilated.
    y = lax.conv_general_dilated(
        x, w, window_strides=(stride, stride),
        padding=((pad, pad), (pad, pad)),
        dimension_numbers=("NCHW", "OIHW", "NCHW"))
    if b is not None:
        y = y + b.reshape(1, -1, 1, 1)
    return y


def _leaky_relu(x, slope=0.01):
    return jnp.where(x >= 0, x, slope * x)


def make_discriminator_params(key, image_size=32, conv_dim=16, c_dim=5,
                              repeat_num=3):
    keys = iter(jax.random.split(key, 64))

    def w(shape, fan_in):
        return jax.random.normal(next(keys), shape, jnp.float32) * (1.0 / fan_in) ** 0.5

    params = {
        "conv0_w": w((conv_dim, 3, 4, 4), 3 * 16),
        "conv0_b": jnp.zeros((conv_dim,), jnp.float32),
        "blocks": [],
    }
    curr = conv_dim
    for _ in range(1, repeat_num):
        nxt = curr * 2
        params["blocks"].append({
            "conv_w": w((nxt, curr, 4, 4), curr * 16),
            "conv_b": jnp.zeros((nxt,), jnp.float32),
            "se_w1": w((nxt // 16, nxt), nxt),        # SELayer Linear(C, C//16)
            "se_w2": w((nxt, nxt // 16), nxt // 16),  # SELayer Linear(C//16, C)
            "ca_w1": w((nxt // 8, nxt), nxt),         # CAModule Conv1x1(C, C//8)
            "ca_w2": w((nxt, nxt // 8), nxt // 8),    # CAModule Conv1x1(C//8, C)
        })
        curr = nxt
    ks = image_size // (2 ** repeat_num)
    params["conv1_w"] = w((1, curr, 3, 3), curr * 9)
    params["conv2_w"] = w((c_dim, curr, ks, ks), curr * ks * ks)
    return params


def discriminator_forward(params, x, *, use_pallas=True, force_two_pass=False):
    ca = (functools.partial(channel_attention, force_two_pass=force_two_pass)
          if use_pallas else _channel_attention_ref)
    h = _leaky_relu(_conv2d(x, params["conv0_w"], params["conv0_b"],
                            stride=2, pad=1))
    for blk in params["blocks"]:
        h = _conv2d(h, blk["conv_w"], blk["conv_b"], stride=2, pad=1)
        h = ca(h, blk["se_w1"], blk["se_w2"])     # SELayer
        h = ca(h, blk["ca_w1"], blk["ca_w2"])     # CAModule
        h = _leaky_relu(h)
    out_src = _conv2d(h, params["conv1_w"], stride=1, pad=1)
    out_cls = _conv2d(h, params["conv2_w"], stride=1, pad=0)
    return out_src, out_cls.reshape(out_cls.shape[0], out_cls.shape[1])


# ---------------------------------------------------------------------------
# self-test
# ---------------------------------------------------------------------------

if __name__ == "__main__":
    key = jax.random.PRNGKey(0)
    k_params, k_x, k_h = jax.random.split(key, 3)

    image_size, conv_dim, c_dim, repeat_num = 32, 16, 5, 3
    B = 2
    params = make_discriminator_params(k_params, image_size, conv_dim,
                                       c_dim, repeat_num)
    x = jax.random.normal(k_x, (B, 3, image_size, image_size), jnp.float32)

    # Full Discriminator forward with Pallas channel attention.
    out_src, out_cls = discriminator_forward(params, x, use_pallas=True)
    out_src, out_cls = jax.block_until_ready((out_src, out_cls))
    side = image_size // (2 ** repeat_num)
    assert out_src.shape == (B, 1, side, side)
    assert out_cls.shape == (B, c_dim)

    ref_src, ref_cls = discriminator_forward(params, x, use_pallas=False)
    assert jnp.allclose(out_src, ref_src, atol=1e-3, rtol=1e-3), "out_src mismatch"
    assert jnp.allclose(out_cls, ref_cls, atol=1e-3, rtol=1e-3), "out_cls mismatch"

    # Isolated checks of both kernel paths (fused and two-pass tiled).
    blk = params["blocks"][0]
    h0 = jax.random.normal(k_h, (B, conv_dim * 2, 8, 8), jnp.float32)
    r0 = _channel_attention_ref(h0, blk["ca_w1"], blk["ca_w2"])

    a_fused = jax.block_until_ready(
        channel_attention(h0, blk["ca_w1"], blk["ca_w2"]))
    assert jnp.allclose(a_fused, r0, atol=1e-5, rtol=1e-5), "fused path mismatch"

    a_2pass = jax.block_until_ready(
        channel_attention(h0, blk["ca_w1"], blk["ca_w2"], force_two_pass=True))
    assert jnp.allclose(a_2pass, r0, atol=1e-5, rtol=1e-5), "two-pass path mismatch"

    print("KERNEL_OK")
</pallas_src>

<mosaic_0001>
module attributes {stable_mosaic.version = 11 : i64} {
  func.func @kernel(%arg0: i32, %arg1: memref<1x32x128xf32, #tpu.memory_space<vmem>>, %arg2: memref<32x2xf32, #tpu.memory_space<vmem>>, %arg3: memref<32x2xf32, #tpu.memory_space<vmem>>, %arg4: memref<1x32x128xf32, #tpu.memory_space<vmem>>) attributes {dimension_semantics = [#tpu.dimension_semantics<parallel>], iteration_bounds = array<i64: 2>, scalar_prefetch = 0 : i64, scratch_operands = 0 : i64, tpu.core_type = #tpu.core_type<tc>, window_params = [{transform_indices = @transform_0, window_bounds = array<i64: 1, 32, 128>}, {pipeline_mode = #tpu.pipeline_mode<synchronous>, transform_indices = @transform_1, window_bounds = array<i64: 32, 2>}, {pipeline_mode = #tpu.pipeline_mode<synchronous>, transform_indices = @transform_2, window_bounds = array<i64: 32, 2>}, {transform_indices = @transform_3, window_bounds = array<i64: 1, 32, 128>}]} {
    %c0 = arith.constant 0 : index
    %c0_0 = arith.constant 0 : index
    %c0_1 = arith.constant 0 : index
    %0 = vector.load %arg1[%c0, %c0_0, %c0_1] : memref<1x32x128xf32, #tpu.memory_space<vmem>>, vector<1x32x128xf32>
    %1 = vector.shape_cast %0 : vector<1x32x128xf32> to vector<32x128xf32>
    %cst = arith.constant dense<0.000000e+00> : vector<32xf32>
    %2 = vector.multi_reduction <add>, %1, %cst [1] : vector<32x128xf32> to vector<32xf32>
    %3 = vector.shape_cast %2 : vector<32xf32> to vector<32x1xf32>
    %cst_2 = arith.constant 1.562500e-02 : f32
    %4 = vector.broadcast %cst_2 : f32 to vector<32x1xf32>
    %5 = arith.mulf %3, %4 : vector<32x1xf32>
    %c0_3 = arith.constant 0 : index
    %c0_4 = arith.constant 0 : index
    %6 = vector.load %arg2[%c0_3, %c0_4] : memref<32x2xf32, #tpu.memory_space<vmem>>, vector<32x2xf32>
    %7 = vector.broadcast %5 : vector<32x1xf32> to vector<32x2xf32>
    %8 = arith.mulf %6, %7 : vector<32x2xf32>
    %cst_5 = arith.constant dense<0.000000e+00> : vector<2xf32>
    %9 = vector.multi_reduction <add>, %8, %cst_5 [0] : vector<32x2xf32> to vector<2xf32>
    %10 = vector.shape_cast %9 : vector<2xf32> to vector<1x2xf32>
    %cst_6 = arith.constant 0.000000e+00 : f32
    %11 = vector.broadcast %cst_6 : f32 to vector<1x2xf32>
    %12 = arith.maximumf %10, %11 : vector<1x2xf32>
    %c0_7 = arith.constant 0 : index
    %c0_8 = arith.constant 0 : index
    %13 = vector.load %arg3[%c0_7, %c0_8] : memref<32x2xf32, #tpu.memory_space<vmem>>, vector<32x2xf32>
    %14 = vector.broadcast %12 : vector<1x2xf32> to vector<32x2xf32>
    %15 = arith.mulf %13, %14 : vector<32x2xf32>
    %cst_9 = arith.constant dense<0.000000e+00> : vector<32xf32>
    %16 = vector.multi_reduction <add>, %15, %cst_9 [1] : vector<32x2xf32> to vector<32xf32>
    %17 = vector.shape_cast %16 : vector<32xf32> to vector<32x1xf32>
    %18 = arith.negf %17 : vector<32x1xf32>
    %19 = math.exp %18 : vector<32x1xf32>
    %cst_10 = arith.constant 1.000000e+00 : f32
    %20 = vector.broadcast %cst_10 : f32 to vector<32x1xf32>
    %21 = arith.addf %20, %19 : vector<32x1xf32>
    %22 = arith.divf %20, %21 : vector<32x1xf32>
    %c0_11 = arith.constant 0 : index
    %c0_12 = arith.constant 0 : index
    %c0_13 = arith.constant 0 : index
    %23 = vector.load %arg1[%c0_11, %c0_12, %c0_13] : memref<1x32x128xf32, #tpu.memory_space<vmem>>, vector<1x32x128xf32>
    %24 = vector.shape_cast %23 : vector<1x32x128xf32> to vector<32x128xf32>
    %25 = vector.broadcast %22 : vector<32x1xf32> to vector<32x128xf32>
    %26 = arith.mulf %24, %25 : vector<32x128xf32>
    %c0_14 = arith.constant 0 : index
    %c0_15 = arith.constant 0 : index
    %c0_16 = arith.constant 0 : index
    %27 = vector.load %arg4[%c0_14, %c0_15, %c0_16] : memref<1x32x128xf32, #tpu.memory_space<vmem>>, vector<1x32x128xf32>
    %28 = vector.shape_cast %27 : vector<1x32x128xf32> to vector<32x128xf32>
    %29 = vector.shape_cast %26 : vector<32x128xf32> to vector<1x32x128xf32>
    tpu.vector_store %arg4[%c0_14, %c0_15, %c0_16], %29 {strides = array<i32>} : memref<1x32x128xf32, #tpu.memory_space<vmem>>, vector<1x32x128xf32>,
    return
  }
  func.func @transform_0(%arg0: i32) -> (i32, i32, i32) {
    %c0_i32 = arith.constant 0 : i32
    %c0_i32_0 = arith.constant 0 : i32
    %c0_i32_1 = arith.constant 0 : i32
    return %arg0, %c0_i32, %c0_i32_0 : i32, i32, i32
  }
  func.func @transform_1(%arg0: i32) -> (i32, i32) {
    %c0_i32 = arith.constant 0 : i32
    %c0_i32_0 = arith.constant 0 : i32
    %c0_i32_1 = arith.constant 0 : i32
    return %c0_i32, %c0_i32_0 : i32, i32
  }
  func.func @transform_2(%arg0: i32) -> (i32, i32) {
    %c0_i32 = arith.constant 0 : i32
    %c0_i32_0 = arith.constant 0 : i32
    %c0_i32_1 = arith.constant 0 : i32
    return %c0_i32, %c0_i32_0 : i32, i32
  }
  func.func @transform_3(%arg0: i32) -> (i32, i32, i32) {
    %c0_i32 = arith.constant 0 : i32
    %c0_i32_0 = arith.constant 0 : i32
    %c0_i32_1 = arith.constant 0 : i32
    return %arg0, %c0_i32, %c0_i32_0 : i32, i32, i32
  }
}

</mosaic_0001>

<llo_original>
// kernel: tpu_custom_call.1
$region0: #{tpu_custom_call.1}
  #allocation0 [shape = 'u32[]', space=smem, size = 0x4, offset = 0x4, fixed_abs, tag = 'smem constant byte address 0x4 - core index']
  #allocation1 [shape = 'u32[144,128]{1,0:T(1,128)}', space=vmem, size = 0x12000, scoped, tag = 'internal scratch']
  %s0 = inlined_call_operand.vmem [shape: f32[2,32,128], index: 0, kind: input, shape index: {}]
  %s1 = inlined_call_operand.vmem [shape: f32[32,2], index: 1, kind: input, shape index: {}]
  %s2 = inlined_call_operand.vmem [shape: f32[32,2], index: 2, kind: input, shape index: {}]
  %s3 = inlined_call_operand.hbm [shape: f32[2,32,128], index: 3, kind: output, shape index: {}]
  %s4 = sld [smem:[#allocation0]]
  $region45: #{tpu_custom_call.1} parent=0
    _
  %s6 = ssub.s32 1, %s4
  %s7 = scalar_select 0, %s6, %s4
  $region1: #{tpu_custom_call.1} parent=0
    #allocation2 [shape = 'u8[32768]{0}', space=vmem, size = 0x8000, scoped, tag = 'output window, operand 0']
    #allocation3 [shape = 's32[2]{0}', space=sflag, size = 0x8, scoped, tag = 'scoped memory for tpu_custom_call.1']
    %8 = vsyncpa [#allocation3], 0
    %s9 = scalar_lea.sflag [#allocation3], 1
    %10 = vsyncpa %s9, 0
    loop: start=0, step=1, limit=4
    $region2: #{tpu_custom_call.1} parent=1 // loop_pre_header
      _
    $region3: #{tpu_custom_call.1} parent=1 // loop_header
      %s12 = sphi 0, %s16
      %p13 = scmp.ge.s32.totalorder %s12, 4
      %s22 = sphi 0, %s24
      %s25 = sphi 0, %s22
      %s26 = sphi 0, %s25
      %s42 = sphi 0, %s26
      %s46 = sphi 0, %s46
      %s48 = sphi 0, %s46
      %s49 = sphi 0, %s48
      %s63 = sphi 0, %s49
      %s67 = sphi 0, %s67
      %s69 = sphi 0, %s67
      %s70 = sphi 0, %s69
      %s84 = sphi 0, %s70
      %s90 = sphi 0, %s92
      %s93 = sphi 0, %s90
      %s94 = sphi 0, %s93
      %s110 = sphi 0, %s94
    $region4: #{tpu_custom_call.1} parent=1 // loop_header_branch
      %15 = sbr.rel (%p13) target = $region8
    $region5: #{tpu_custom_call.1} parent=1 // loop_body
      %s17 = ssub.s32 %s12, 1
      %s18 = ssub.s32 %s12, 2
      %s19 = sadd.s32 %s12, 1
      %s20 = ssub.s32 %s12, %s19
      %p21 = scmp.eq.s32.totalorder %s20, 0
      %s23 = sadd.s32 %s22, 1
      %s24 = scalar_select %p21, %s22, %s23
      %p27 = pneg %p21
      %p28 = scmp.eq.s32.totalorder %s12, 1
      %p29 = por %p27, %p28
      %p30 = scmp.ne.s32.totalorder %s22, %s25
      %p31 = scmp.eq.s32.totalorder %s12, 0
      %p32 = por %p30, %p31
      %p33 = scmp.ne.s32.totalorder %s22, %s25
      %p34 = scmp.eq.s32.totalorder %s17, 1
      %p35 = por %p33, %p34
      %p36 = scmp.ne.s32.totalorder %s25, %s26
      %p37 = scmp.eq.s32.totalorder %s17, 0
      %p38 = por %p36, %p37
      %p39 = scmp.ne.s32.totalorder %s25, %s26
      %p40 = scmp.eq.s32.totalorder %s18, 1
      %p41 = por %p39, %p40
      %p43 = scmp.ne.s32.totalorder %s26, %s42
      %p44 = scmp.eq.s32.totalorder %s18, 0
      %p45 = por %p43, %p44
      %s47 = sadd.s32 %s46, 1
      %p50 = scmp.eq.s32.totalorder %s12, 1
      %p51 = scmp.ne.s32.totalorder %s46, %s48
      %p52 = scmp.eq.s32.totalorder %s12, 0
      %p53 = por %p51, %p52
      %p54 = scmp.ne.s32.totalorder %s46, %s48
      %p55 = scmp.eq.s32.totalorder %s17, 1
      %p56 = por %p54, %p55
      %p57 = scmp.ne.s32.totalorder %s48, %s49
      %p58 = scmp.eq.s32.totalorder %s17, 0
      %p59 = por %p57, %p58
      %p60 = scmp.ne.s32.totalorder %s48, %s49
      %p61 = scmp.eq.s32.totalorder %s18, 1
      %p62 = por %p60, %p61
      %p64 = scmp.ne.s32.totalorder %s49, %s63
      %p65 = scmp.eq.s32.totalorder %s18, 0
      %p66 = por %p64, %p65
      %s68 = sadd.s32 %s67, 1
      %p71 = scmp.eq.s32.totalorder %s12, 1
      %p72 = scmp.ne.s32.totalorder %s67, %s69
      %p73 = scmp.eq.s32.totalorder %s12, 0
      %p74 = por %p72, %p73
      %p75 = scmp.ne.s32.totalorder %s67, %s69
      %p76 = scmp.eq.s32.totalorder %s17, 1
      %p77 = por %p75, %p76
      %p78 = scmp.ne.s32.totalorder %s69, %s70
      %p79 = scmp.eq.s32.totalorder %s17, 0
      %p80 = por %p78, %p79
      %p81 = scmp.ne.s32.totalorder %s69, %s70
      %p82 = scmp.eq.s32.totalorder %s18, 1
      %p83 = por %p81, %p82
      %p85 = scmp.ne.s32.totalorder %s70, %s84
      %p86 = scmp.eq.s32.totalorder %s18, 0
      %p87 = por %p85, %p86
      %s88 = ssub.s32 %s12, %s19
      %p89 = scmp.eq.s32.totalorder %s88, 0
      %s91 = sadd.s32 %s90, 1
      %s92 = scalar_select %p89, %s90, %s91
      %p95 = pneg %p89
      %p96 = scmp.eq.s32.totalorder %s12, 1
      %p97 = por %p95, %p96
      %p98 = scmp.ne.s32.totalorder %s90, %s93
      %p99 = scmp.eq.s32.totalorder %s12, 0
      %p100 = por %p98, %p99
      %p101 = scmp.ne.s32.totalorder %s90, %s93
      %p102 = scmp.eq.s32.totalorder %s17, 1
      %p103 = por %p101, %p102
      %p104 = scmp.ne.s32.totalorder %s93, %s94
      %p105 = scmp.eq.s32.totalorder %s17, 0
      %p106 = por %p104, %p105
      %p107 = scmp.ne.s32.totalorder %s93, %s94
      %p108 = scmp.eq.s32.totalorder %s18, 1
      %p109 = por %p107, %p108
      %p111 = scmp.ne.s32.totalorder %s94, %s110
      %p112 = scmp.eq.s32.totalorder %s18, 0
      %p113 = por %p111, %p112
      %p114 = scmp.le.s32.totalorder 1, %s12
      %p115 = scmp.lt.s32.totalorder %s12, 3
      %p116 = pnand %p114, %p115
      %p117 = pneg %p116
      // Predicated region
      $region9: #{tpu_custom_call.1} parent=5 // pred_check
        _
      $region10: #{tpu_custom_call.1} parent=5 // pred_check_branch
        %119 = sbr.rel (%p116) target = $region12
      $region11: #{tpu_custom_call.1} parent=5 // pred_region
        %s120 = ssub.s32 %s12, 1
        // Predicated region
        $region13: #{tpu_custom_call.1} parent=11 // pred_check
          %p121 = pneg %p59
        $region14: #{tpu_custom_call.1} parent=11 // pred_check_branch
          %123 = sbr.rel (%p121) target = $region16
        $region15: #{tpu_custom_call.1} parent=11 // pred_region
          _
        $region16: #{tpu_custom_call.1} parent=11 // pred_fallthru
          _
        // Predicated region
        $region17: #{tpu_custom_call.1} parent=11 // pred_check
          %p124 = pneg %p80
        $region18: #{tpu_custom_call.1} parent=11 // pred_check_branch
          %126 = sbr.rel (%p124) target = $region20
        $region19: #{tpu_custom_call.1} parent=11 // pred_region
          _
        $region20: #{tpu_custom_call.1} parent=11 // pred_fallthru
          _
      $region12: #{tpu_custom_call.1} parent=5 // pred_fallthru
        _
      %p127 = scmp.lt.s32.totalorder %s12, 2
      // Predicated region
      $region21: #{tpu_custom_call.1} parent=5 // pred_check
        %p128 = pneg %p127
      $region22: #{tpu_custom_call.1} parent=5 // pred_check_branch
        %130 = sbr.rel (%p128) target = $region24
      $region23: #{tpu_custom_call.1} parent=5 // pred_region
        // Predicated region
        $region25: #{tpu_custom_call.1} parent=23 // pred_check
          %p131 = pneg %p32
        $region26: #{tpu_custom_call.1} parent=23 // pred_check_branch
          %133 = sbr.rel (%p131) target = $region28
        $region27: #{tpu_custom_call.1} parent=23 // pred_region
          %p134 = scmp.lt.s32.totalorder %s12, 1
          %s135 = scalar_select %p134, %s12, 1
          %s136 = smul.addr %s135, 4
          %s137 = smul.addr %s136, 8
          %s138 = scalar_lea.vmem %s0, %s137
        $region28: #{tpu_custom_call.1} parent=23 // pred_fallthru
          _
      $region24: #{tpu_custom_call.1} parent=5 // pred_fallthru
        _
      %p139 = scmp.le.s32.totalorder 1, %s12
      %p140 = scmp.lt.s32.totalorder %s12, 3
      %p141 = pnand %p139, %p140
      %p142 = pneg %p141
      // Predicated region
      $region29: #{tpu_custom_call.1} parent=5 // pred_check
        _
      $region30: #{tpu_custom_call.1} parent=5 // pred_check_branch
        %144 = sbr.rel (%p141) target = $region32
      $region31: #{tpu_custom_call.1} parent=5 // pred_region
        %s145 = ssub.s32 %s12, 1
        %p146 = scmp.lt.s32.totalorder %s17, 1
        %s147 = scalar_select %p146, %s17, 1
        %s148 = smul.addr %s147, 4
        %s149 = smul.addr %s148, 8
        %s150 = scalar_lea.vmem %s0, %s149
        %p151 = pneg %p38
        %p152 = pneg %p35
        %p153 = pneg %p59
        %p154 = pneg %p56
        %p155 = pneg %p80
        %p156 = pneg %p77
        %p157 = pneg %p106
        %p158 = pneg %p103
        %s159 = sand.u32 %s93, 1
        %s160 = scalar_lea.sflag [#allocation3], %s159
        %s161 = sand.u32 %s93, 1
        %s162 = smul.addr %s161, 32
        %s163 = scalar_lea.vmem [#allocation2], %s162
        %p164 = scmp.lt.s32.totalorder %s17, 1
        %s165 = scalar_select %p164, %s17, 1
        %s166 = smul.addr %s165, 4
        %s167 = smul.addr %s166, 8
        %s168 = scalar_lea.vmem %s0, %s167
        %v169 = vld [vmem:[%s168] sm:$0xff]
        %v170 = vld [vmem:[%s168 + $0x8] sm:$0xff]
        %v171 = vld [vmem:[%s168 + $0x10] sm:$0xff]
        %v172 = vld [vmem:[%s168 + $0x18] sm:$0xff]
        %173 = vadd.xlane.f32.xlu0 %v169
        %v174 = vpop.xlane.xlu0 %173
        %175 = vadd.xlane.f32.xlu0 %v170
        %v176 = vpop.xlane.xlu0 %175
        %177 = vadd.xlane.f32.xlu0 %v171
        %v178 = vpop.xlane.xlu0 %177
        %179 = vadd.xlane.f32.xlu0 %v172
        %v180 = vpop.xlane.xlu0 %179
        %v181 = vmul.f32 %v174, 0.015625
        %v182 = vmul.f32 %v176, 0.015625
        %v183 = vmul.f32 %v178, 0.015625
        %v184 = vmul.f32 %v180, 0.015625
        %v185 = vld [vmem:[%s1] sm:$0xff]
        %v186 = vld [vmem:[%s1 + $0x8] sm:$0xff]
        %v187 = vld [vmem:[%s1 + $0x10] sm:$0xff]
        %v188 = vld [vmem:[%s1 + $0x18] sm:$0xff]
        %v189 = vmul.f32 %v185, %v181
        %v190 = vmul.f32 %v186, %v182
        %v191 = vmul.f32 %v187, %v183
        %v192 = vmul.f32 %v188, %v184
        %vm193 = vcmask 15360
        %v194 = vsel %vm193, %v189, 0.0
        %v195 = vsel %vm193, %v190, 0.0
        %v196 = vadd.f32 %v194, %v195
        %v197 = vsel %vm193, %v191, 0.0
        %v198 = vadd.f32 %v196, %v197
        %v199 = vsel %vm193, %v192, 0.0
        %v200 = vadd.f32 %v198, %v199
        %v201 = vrot.slane %v200, 4
        %v202 = vadd.f32 %v200, %v201
        %v203 = vrot.slane %v202, 2
        %v204 = vadd.f32 %v202, %v203
        %v205 = vrot.slane %v204, 1
        %v206 = vadd.f32 %v204, %v205
        %v207 = vmax.f32 %v206, 0.0
        %v208 = vld [vmem:[%s2] sm:$0xff]
        %v209 = vld [vmem:[%s2 + $0x8] sm:$0xff]
        %v210 = vld [vmem:[%s2 + $0x10] sm:$0xff]
        %v211 = vld [vmem:[%s2 + $0x18] sm:$0xff]
        %v212 = vmul.f32 %v208, %v207
        %v213 = vmul.f32 %v209, %v207
        %v214 = vmul.f32 %v210, %v207
        %v215 = vmul.f32 %v211, %v207
        %v216 = vsel %vm193, %v212, 0.0
        %217 = vadd.xlane.f32.xlu0 %v216
        %v218 = vpop.xlane.xlu0 %217
        %v219 = vsel %vm193, %v213, 0.0
        %220 = vadd.xlane.f32.xlu0 %v219
        %v221 = vpop.xlane.xlu0 %220
        %v222 = vsel %vm193, %v214, 0.0
        %223 = vadd.xlane.f32.xlu0 %v222
        %v224 = vpop.xlane.xlu0 %223
        %v225 = vsel %vm193, %v215, 0.0
        %226 = vadd.xlane.f32.xlu0 %v225
        %v227 = vpop.xlane.xlu0 %226
        %v228 = vxor.u32 %v218, 2147483648
        %v229 = vxor.u32 %v221, 2147483648
        %v230 = vxor.u32 %v224, 2147483648
        %v231 = vxor.u32 %v227, 2147483648
        %v232 = vmul.f32 %v228, 1.442695
        %v233 = vpow.pop %v232
        %v234 = vmul.f32 %v229, 1.442695
        %v235 = vpow.pop %v234
        %v236 = vmul.f32 %v230, 1.442695
        %v237 = vpow.pop %v236
        %v238 = vmul.f32 %v231, 1.442695
        %v239 = vpow.pop %v238
        %v240 = vadd.f32 %v233, 1.0
        %v241 = vadd.f32 %v235, 1.0
        %v242 = vadd.f32 %v237, 1.0
        %v243 = vadd.f32 %v239, 1.0
        %v244 = vrcp.pop %v240
        %v245 = vmul.f32 1.0, %v244
        %v246 = vrcp.pop %v241
        %v247 = vmul.f32 1.0, %v246
        %v248 = vrcp.pop %v242
        %v249 = vmul.f32 1.0, %v248
        %v250 = vrcp.pop %v243
        %v251 = vmul.f32 1.0, %v250
        %v252 = vmul.f32 %v169, %v245
        %v253 = vmul.f32 %v170, %v247
        %v254 = vmul.f32 %v171, %v249
        %v255 = vmul.f32 %v172, %v251
        %256 = vst [vmem:[%s163] sm:$0xff] %v252
        %257 = vst [vmem:[%s163 + $0x8] sm:$0xff] %v253
        %258 = vst [vmem:[%s163 + $0x10] sm:$0xff] %v254
        %259 = vst [vmem:[%s163 + $0x18] sm:$0xff] %v255
        %s260 = sand.u32 %s93, 1
        %s261 = scalar_lea.sflag [#allocation3], %s260
        %s262 = sand.u32 %s93, 1
        %s263 = smul.addr %s262, 32
        %s264 = scalar_lea.vmem [#allocation2], %s263
        // Predicated region
        $region33: #{tpu_custom_call.1} parent=31 // pred_check
          %p265 = pneg %p103
        $region34: #{tpu_custom_call.1} parent=31 // pred_check_branch
          %267 = sbr.rel (%p265) target = $region36
        $region35: #{tpu_custom_call.1} parent=31 // pred_region
          %s269 = ssub.s32 512, 512
          %270 = vsyncadd %s261, %s269
          %s271 = smul.addr %s17, 4
          %s272 = smul.addr %s271, 128
          %s273 = scalar_lea.hbm %s3, %s272
          %s274 = sshll.u32 %s264, 4
          %s275 = int_to_ptr.vmem [resolvable:$true] %s274
          %280 = dma.vmem_to_hbm [thread:$0]  %s275, 512, %s273, %s261, 128, 128, 8
        $region36: #{tpu_custom_call.1} parent=31 // pred_fallthru
          _
      $region32: #{tpu_custom_call.1} parent=5 // pred_fallthru
        _
      %p281 = scmp.le.s32.totalorder 2, %s12
      // Predicated region
      $region37: #{tpu_custom_call.1} parent=5 // pred_check
        %p282 = pneg %p281
      $region38: #{tpu_custom_call.1} parent=5 // pred_check_branch
        %284 = sbr.rel (%p282) target = $region40
      $region39: #{tpu_custom_call.1} parent=5 // pred_region
        %s285 = ssub.s32 %s12, 2
        // Predicated region
        $region41: #{tpu_custom_call.1} parent=39 // pred_check
          %p286 = pneg %p109
        $region42: #{tpu_custom_call.1} parent=39 // pred_check_branch
          %288 = sbr.rel (%p286) target = $region44
        $region43: #{tpu_custom_call.1} parent=39 // pred_region
          %s289 = sand.u32 %s94, 1
          %s290 = scalar_lea.sflag [#allocation3], %s289
          %s291 = sand.u32 %s94, 1
          %s292 = smul.addr %s291, 32
          %s293 = scalar_lea.vmem [#allocation2], %s292
          %294 = dma.done %s290, 512
        $region44: #{tpu_custom_call.1} parent=39 // pred_fallthru
          _
      $region40: #{tpu_custom_call.1} parent=5 // pred_fallthru
        _
    $region6: #{tpu_custom_call.1} parent=1 // loop_footer
      %s16 = sadd.s32 1, %s12
    $region7: #{tpu_custom_call.1} parent=1 // loop_footer_branch
      %11 = sbr.rel target = $region3
    $region8: #{tpu_custom_call.1} parent=1 // loop_exit
      _
    %295 = vsyncpa [#allocation3], 1
    %s296 = scalar_lea.sflag [#allocation3], 1
    %297 = vsyncpa %s296, 1

</llo_original>
